<compile_context>
chip_gen: v5e
topology: v5e:2x2
jax: 0.10.0
libtpu: 0.0.40
codegen_flags: <defaults>
</compile_context>

<pallas_src>
import math
from functools import partial

import jax
import jax.numpy as jnp
from jax.experimental import pallas as pl
from jax.experimental.pallas import tpu as pltpu


def _round_up(x, m):
    return ((x + m - 1) // m) * m


# ---------------------------------------------------------------------------
# Pass 1: support = x @ W   (row tiles x optional nfeat K-tiles)
# ---------------------------------------------------------------------------
def _support_kernel(w_ref, x_ref, s_ref):
    @pl.when(pl.program_id(1) == 0)
    def _():
        s_ref[...] = jnp.zeros_like(s_ref)

    s_ref[...] += jnp.dot(x_ref[...], w_ref[...],
                          preferred_element_type=jnp.float32)


# ---------------------------------------------------------------------------
# Pass 2: h = adj @ support + b ; q = student-t(h, mu)  (row tiles x K tiles)
# ---------------------------------------------------------------------------
def _gc_dec_kernel(b_ref, mut_ref, musq_ref, mask_ref, support_ref, adj_ref,
                   z_ref, q_ref, acc_ref, *, inv_alpha, pow_exp, tk,
                   support_resident):
    k = pl.program_id(1)

    @pl.when(k == 0)
    def _():
        acc_ref[...] = jnp.zeros_like(acc_ref)

    if support_resident:
        # support is fully VMEM-resident; take this K-slice without re-DMA.
        start = pl.multiple_of(k * tk, tk)
        sup = support_ref[pl.ds(start, tk), :]
    else:
        sup = support_ref[...]

    # MXU: accumulate this K-slice of adj @ support.
    acc_ref[...] += jnp.dot(adj_ref[...], sup,
                            preferred_element_type=jnp.float32)

    @pl.when(k == pl.num_programs(1) - 1)
    def _():
        h = acc_ref[...] + b_ref[...]                  # (TM, nhid)
        z_ref[...] = h.astype(z_ref.dtype)

        # dist = ||h||^2 + ||mu||^2 - 2 * h @ mu^T   (MXU, lane-dense C=128)
        h_sq = jnp.sum(h * h, axis=1, keepdims=True)                          # (TM, 1)
        cross = jnp.dot(h, mut_ref[...], preferred_element_type=jnp.float32)  # (TM, Cp)
        dist = jnp.maximum(h_sq + musq_ref[...] - 2.0 * cross, 0.0)

        q = pl.reciprocal(1.0 + dist * inv_alpha + 1e-8, approx=False)
        q = q ** pow_exp                 # torch's trailing /2 cancels below
        q = q * mask_ref[...]            # zero padded cluster columns
        q = q * pl.reciprocal(jnp.sum(q, axis=1, keepdims=True), approx=False)
        q_ref[...] = q.astype(q_ref.dtype)


# ---------------------------------------------------------------------------
# Tile selection helpers
# ---------------------------------------------------------------------------
def _choose_row_tiles(N, row_tile, k_tile):
    """Returns (tm, tk, n_pad) with tm | n_pad, tk | n_pad, 8 | tm, tile-legal tk."""
    row_tile = max(8, _round_up(row_tile, 8))
    k_tile = max(128, _round_up(k_tile, 128))
    if N <= row_tile:
        tm = _round_up(N, 8)
        n_pad = tm
        tk = n_pad                       # single tile; last dim == full dim
    elif N <= k_tile:
        tm = row_tile
        n_pad = _round_up(N, tm)
        tk = n_pad                       # single K step
    else:
        tm = row_tile
        tk = k_tile
        n_pad = _round_up(N, math.lcm(tm, tk))
    return tm, tk, n_pad


def _choose_feat_tiles(nfeat, k_tile):
    """Returns (tkf, f_pad): K-tile over nfeat only when nfeat is large."""
    k_tile = max(128, _round_up(k_tile, 128))
    if nfeat <= k_tile:
        return nfeat, nfeat
    return k_tile, _round_up(nfeat, k_tile)


def _vmem_cap_bytes():
    """~75% of physical VMEM, clamped: ~96 MiB on v5e/v6e, ~48 MiB on v7x."""
    try:
        phys = int(pltpu.get_tpu_info().vmem_capacity_bytes)
    except Exception:
        phys = 64 * 1024 * 1024          # v7x-safe fallback
    return min(96 * 1024 * 1024, max(32 * 1024 * 1024, (phys * 3) // 4))


# ---------------------------------------------------------------------------
# Wrapper
# ---------------------------------------------------------------------------
def simple_gc_dec_forward(x, adj, weight, bias, mu, alpha=0.2,
                          row_tile=256, k_tile=2048,
                          max_resident_support_bytes=6 * 1024 * 1024,
                          use_bf16=False):
    N, nfeat = x.shape
    nhid = weight.shape[1]
    ncl = mu.shape[0]
    f32 = jnp.float32
    mxu_dtype = jnp.bfloat16 if use_bf16 else f32

    tm, tk, n_pad = _choose_row_tiles(N, row_tile, k_tile)
    tkf, f_pad = _choose_feat_tiles(nfeat, k_tile)
    c_pad = _round_up(max(ncl, 128), 128)        # lane-dense cluster dimension
    vmem_cap = _vmem_cap_bytes()

    # Padded operands (padded rows/features are zero; padded clusters masked).
    x_p = jnp.zeros((n_pad, f_pad), f32).at[:N, :nfeat].set(x.astype(f32))
    w_p = jnp.zeros((f_pad, nhid), f32).at[:nfeat].set(weight.astype(f32))
    adj_p = jnp.zeros((n_pad, n_pad), f32).at[:N, :N].set(
        adj.astype(f32)).astype(mxu_dtype)
    mu_p = jnp.zeros((c_pad, nhid), f32).at[:ncl].set(mu.astype(f32))
    mut = mu_p.T                                            # (nhid, c_pad)
    musq = jnp.sum(mu_p * mu_p, axis=1).reshape(1, c_pad)   # ||mu||^2 precomputed
    mask = (jnp.arange(c_pad) < ncl).astype(f32).reshape(1, c_pad)
    bias2d = bias.reshape(1, nhid).astype(f32)

    # ---- pass 1: support = x @ W (accumulated in the f32 output block) ----
    support = pl.pallas_call(
        _support_kernel,
        out_shape=jax.ShapeDtypeStruct((n_pad, nhid), f32),
        grid=(n_pad // tm, f_pad // tkf),
        in_specs=[
            pl.BlockSpec((tkf, nhid), lambda i, kf: (kf, 0)),   # W K-tile
            pl.BlockSpec((tm, tkf), lambda i, kf: (i, kf)),     # x tile
        ],
        out_specs=pl.BlockSpec((tm, nhid), lambda i, kf: (i, 0)),
        compiler_params=pltpu.CompilerParams(
            dimension_semantics=("parallel", "arbitrary"),
            vmem_limit_bytes=vmem_cap),
    )(w_p, x_p)
    support = support.astype(mxu_dtype)

    # ---- pass 2: graph conv + student-t assignment ----
    sup_itemsize = 2 if use_bf16 else 4
    support_resident = n_pad * nhid * sup_itemsize <= max_resident_support_bytes
    if support_resident:
        # Constant-index full block: fetched once, reused for every (i, k).
        support_spec = pl.BlockSpec((n_pad, nhid), lambda i, k: (0, 0))
    else:
        support_spec = pl.BlockSpec((tk, nhid), lambda i, k: (k, 0))

    # Deeper pipelining on adj hides the last-K epilogue bubble behind the
    # prefetch of the next row tile's adj stream.
    n_steps = (n_pad // tm) * (n_pad // tk)
    adj_kwargs = {}
    if n_steps >= 3:
        adj_kwargs["pipeline_mode"] = pl.Buffered(3)
    adj_spec = pl.BlockSpec((tm, tk), lambda i, k: (i, k), **adj_kwargs)

    flops = 2 * n_pad * n_pad * nhid + 2 * n_pad * nhid * c_pad
    bytes_acc = (adj_p.dtype.itemsize * n_pad * n_pad
                 + sup_itemsize * n_pad * nhid
                 + 4 * (n_pad * nhid + n_pad * c_pad))
    kernel = partial(_gc_dec_kernel,
                     inv_alpha=float(1.0 / alpha),
                     pow_exp=float(alpha + 1.0),
                     tk=tk,
                     support_resident=support_resident)

    z, q = pl.pallas_call(
        kernel,
        out_shape=(jax.ShapeDtypeStruct((n_pad, nhid), f32),
                   jax.ShapeDtypeStruct((n_pad, c_pad), f32)),
        grid=(n_pad // tm, n_pad // tk),
        in_specs=[
            pl.BlockSpec((1, nhid), lambda i, k: (0, 0)),      # bias
            pl.BlockSpec((nhid, c_pad), lambda i, k: (0, 0)),  # mu^T (resident)
            pl.BlockSpec((1, c_pad), lambda i, k: (0, 0)),     # ||mu||^2
            pl.BlockSpec((1, c_pad), lambda i, k: (0, 0)),     # cluster mask
            support_spec,                                      # support
            adj_spec,                                          # adj tile
        ],
        out_specs=(
            pl.BlockSpec((tm, nhid), lambda i, k: (i, 0)),     # z
            pl.BlockSpec((tm, c_pad), lambda i, k: (i, 0)),    # q (lane-dense)
        ),
        scratch_shapes=[pltpu.VMEM((tm, nhid), jnp.float32)],  # h accumulator
        compiler_params=pltpu.CompilerParams(
            dimension_semantics=("parallel", "arbitrary"),
            vmem_limit_bytes=vmem_cap),
        cost_estimate=pl.CostEstimate(flops=flops,
                                      transcendentals=2 * n_pad * c_pad,
                                      bytes_accessed=bytes_acc),
    )(bias2d, mut, musq, mask, support, adj_p)

    return z[:N], q[:N, :ncl]


# ---------------------------------------------------------------------------
# Pure-JAX reference (mirrors the torch module exactly)
# ---------------------------------------------------------------------------
def ref_forward(x, adj, weight, bias, mu, alpha=0.2):
    h = adj @ (x @ weight) + bias.reshape(1, -1)
    dist = jnp.sum((h[:, None, :] - mu[None, :, :]) ** 2, axis=2)
    q = 1.0 / (1.0 + dist / alpha + 1e-8)
    q = q ** (alpha + 1.0) / 2.0
    q = q / jnp.sum(q, axis=1, keepdims=True)
    return h, q


if __name__ == "__main__":
    # Small shapes: N nodes (non-multiple of the tiles to exercise padding),
    # nfeat input features, nhid hidden, n_clusters cluster centers.
    N, nfeat, nhid, n_clusters = 200, 64, 32, 7
    alpha = 0.2

    key = jax.random.PRNGKey(0)
    kx, kadj, kw, kb, kmu = jax.random.split(key, 5)

    x = jax.random.normal(kx, (N, nfeat), dtype=jnp.float32)

    # symmetric, row-normalized dense adjacency
    a = jax.random.uniform(kadj, (N, N), dtype=jnp.float32)
    a = (a + a.T) * 0.5 + jnp.eye(N, dtype=jnp.float32)
    adj = a / jnp.sum(a, axis=1, keepdims=True)

    # GraphConvolution params
    stdv = 1.0 / jnp.sqrt(jnp.float32(nhid))
    weight = jax.random.uniform(kw, (nfeat, nhid), dtype=jnp.float32,
                                minval=-stdv, maxval=stdv)
    bias = jax.random.uniform(kb, (nhid,), dtype=jnp.float32,
                              minval=-stdv, maxval=stdv)
    mu = jax.random.normal(kmu, (n_clusters, nhid), dtype=jnp.float32)

    z_ref, q_ref = ref_forward(x, adj, weight, bias, mu, alpha=alpha)

    def check(z, q):
        assert z.shape == (N, nhid) and q.shape == (N, n_clusters)
        assert jnp.allclose(z, z_ref, rtol=1e-4, atol=1e-4), \
            float(jnp.max(jnp.abs(z - z_ref)))
        assert jnp.allclose(q, q_ref, rtol=1e-4, atol=1e-5), \
            float(jnp.max(jnp.abs(q - q_ref)))
        assert jnp.allclose(jnp.sum(q, axis=1), 1.0, rtol=1e-5, atol=1e-5)

    # Path 1: default large-tile config (single tile for this small N).
    z, q = simple_gc_dec_forward(x, adj, weight, bias, mu, alpha=alpha)
    jax.block_until_ready((z, q))
    check(z, q)

    # Path 2: small tiles to exercise K-accumulation, resident-support
    # dynamic slicing, and the Buffered(3) adj pipelining path.
    z2, q2 = simple_gc_dec_forward(x, adj, weight, bias, mu, alpha=alpha,
                                   row_tile=64, k_tile=128)
    jax.block_until_ready((z2, q2))
    check(z2, q2)

    # Path 3: force the non-resident (K-tiled) support fallback path.
    z3, q3 = simple_gc_dec_forward(x, adj, weight, bias, mu, alpha=alpha,
                                   row_tile=64, k_tile=128,
                                   max_resident_support_bytes=0)
    jax.block_until_ready((z3, q3))
    check(z3, q3)

    # TODO(synk): use_bf16=True halves the adj HBM stream (~2x on the
    # memory-bound pass) but needs ~1e-3 tolerances; left off here.

    print("KERNEL_OK")
</pallas_src>

<mosaic_0001>
module attributes {stable_mosaic.version = 11 : i64} {
  func.func @_support_kernel(%arg0: i32, %arg1: i32, %arg2: memref<64x32xf32, #tpu.memory_space<vmem>>, %arg3: memref<200x64xf32, #tpu.memory_space<vmem>>, %arg4: memref<200x32xf32, #tpu.memory_space<vmem>>) attributes {dimension_semantics = [#tpu.dimension_semantics<parallel>, #tpu.dimension_semantics<arbitrary>], iteration_bounds = array<i64: 1, 1>, scalar_prefetch = 0 : i64, scratch_operands = 0 : i64, tpu.core_type = #tpu.core_type<tc>, window_params = [{transform_indices = @transform_0, window_bounds = array<i64: 64, 32>}, {transform_indices = @transform_1, window_bounds = array<i64: 200, 64>}, {transform_indices = @transform_2, window_bounds = array<i64: 200, 32>}]} {
    %c0_i32 = arith.constant 0 : i32
    %0 = arith.cmpi eq, %arg1, %c0_i32 : i32
    %1 = arith.extui %0 : i1 to i32
    %c0_i32_0 = arith.constant 0 : i32
    %2 = arith.cmpi ne, %1, %c0_i32_0 : i32
    scf.if %2 {
      %cst_8 = arith.constant 0.000000e+00 : f32
      %9 = vector.broadcast %cst_8 : f32 to vector<200x32xf32>
      %c0_9 = arith.constant 0 : index
      %c0_10 = arith.constant 0 : index
      %10 = vector.load %arg4[%c0_9, %c0_10] : memref<200x32xf32, #tpu.memory_space<vmem>>, vector<200x32xf32>
      tpu.vector_store %arg4[%c0_9, %c0_10], %9 {strides = array<i32>} : memref<200x32xf32, #tpu.memory_space<vmem>>, vector<200x32xf32>,
    } else {
    }
    %c0 = arith.constant 0 : index
    %c0_1 = arith.constant 0 : index
    %3 = vector.load %arg4[%c0, %c0_1] : memref<200x32xf32, #tpu.memory_space<vmem>>, vector<200x32xf32>
    %c0_2 = arith.constant 0 : index
    %c0_3 = arith.constant 0 : index
    %4 = vector.load %arg3[%c0_2, %c0_3] : memref<200x64xf32, #tpu.memory_space<vmem>>, vector<200x64xf32>
    %c0_4 = arith.constant 0 : index
    %c0_5 = arith.constant 0 : index
    %5 = vector.load %arg2[%c0_4, %c0_5] : memref<64x32xf32, #tpu.memory_space<vmem>>, vector<64x32xf32>
    %cst = arith.constant dense<0.000000e+00> : vector<200x32xf32>
    %6 = tpu.matmul %4, %5, %cst {dimension_numbers = #tpu.dot_dimension_numbers<[1], [0], [0], [1], [0, 0, 1, 1], [], []>} : vector<200x64xf32>, vector<64x32xf32>, vector<200x32xf32> -> vector<200x32xf32>
    %7 = arith.addf %3, %6 : vector<200x32xf32>
    %c0_6 = arith.constant 0 : index
    %c0_7 = arith.constant 0 : index
    %8 = vector.load %arg4[%c0_6, %c0_7] : memref<200x32xf32, #tpu.memory_space<vmem>>, vector<200x32xf32>
    tpu.vector_store %arg4[%c0_6, %c0_7], %7 {strides = array<i32>} : memref<200x32xf32, #tpu.memory_space<vmem>>, vector<200x32xf32>,
    return
  }
  func.func @transform_0(%arg0: i32, %arg1: i32) -> (i32, i32) {
    %c0_i32 = arith.constant 0 : i32
    %c0_i32_0 = arith.constant 0 : i32
    return %arg1, %c0_i32 : i32, i32
  }
  func.func @transform_1(%arg0: i32, %arg1: i32) -> (i32, i32) {
    %c0_i32 = arith.constant 0 : i32
    return %arg0, %arg1 : i32, i32
  }
  func.func @transform_2(%arg0: i32, %arg1: i32) -> (i32, i32) {
    %c0_i32 = arith.constant 0 : i32
    %c0_i32_0 = arith.constant 0 : i32
    return %arg0, %c0_i32 : i32, i32
  }
}

</mosaic_0001>

<llo_original>
// kernel: tpu_custom_call.1
$region0: #{tpu_custom_call.1}
  #allocation0 [shape = 'u32[]', space=smem, size = 0x4, offset = 0x4, fixed_abs, tag = 'smem constant byte address 0x4 - core index']
  #allocation1 [shape = 'u32[72,128]{1,0:T(1,128)}', space=vmem, size = 0x9000, scoped, tag = 'internal scratch']
  %s0 = inlined_call_operand.vmem [shape: f32[64,32], index: 0, kind: input, shape index: {}]
  %s1 = inlined_call_operand.vmem [shape: f32[200,64], index: 1, kind: input, shape index: {}]
  %s2 = inlined_call_operand.vmem [shape: f32[200,32], index: 2, kind: output, shape index: {}]
  %s3 = sld [smem:[#allocation0]]
  $region22: #{tpu_custom_call.1} parent=0
    _
  %s5 = ssub.s32 1, %s3
  %s6 = scalar_select 0, %s5, %s3
  // Predicated region
  $region2: #{tpu_custom_call.1} parent=0 // pred_check
    _
  $region3: #{tpu_custom_call.1} parent=0 // pred_check_branch
    %8 = sbr.rel (0) target = $region5
  $region4: #{tpu_custom_call.1} parent=0 // pred_region
    _
  $region5: #{tpu_custom_call.1} parent=0 // pred_fallthru
    _
  // Predicated region
  $region6: #{tpu_custom_call.1} parent=0 // pred_check
    _
  $region7: #{tpu_custom_call.1} parent=0 // pred_check_branch
    %10 = sbr.rel (0) target = $region9
  $region8: #{tpu_custom_call.1} parent=0 // pred_region
    _
  $region9: #{tpu_custom_call.1} parent=0 // pred_fallthru
    _
  %p11 = scmp.eq.s32.totalorder 0, 0
  // Predicated region
  $region10: #{tpu_custom_call.1} parent=0 // pred_check
    %p12 = pneg %p11
  $region11: #{tpu_custom_call.1} parent=0 // pred_check_branch
    %14 = sbr.rel (%p12) target = $region13
  $region12: #{tpu_custom_call.1} parent=0 // pred_region
    %vm15 = vcmask 261120
    %16 = vst.msk [vmem:[%s2] sm:$0xff] %vm15, 0.0
    %17 = vst.msk [vmem:[%s2 + $0x8] sm:$0xff] %vm15, 0.0
    %18 = vst.msk [vmem:[%s2 + $0x10] sm:$0xff] %vm15, 0.0
    %19 = vst.msk [vmem:[%s2 + $0x18] sm:$0xff] %vm15, 0.0
    %20 = vst.msk [vmem:[%s2 + $0x20] sm:$0xff] %vm15, 0.0
    %21 = vst.msk [vmem:[%s2 + $0x28] sm:$0xff] %vm15, 0.0
    %22 = vst.msk [vmem:[%s2 + $0x30] sm:$0xff] %vm15, 0.0
    %23 = vst.msk [vmem:[%s2 + $0x38] sm:$0xff] %vm15, 0.0
    %24 = vst.msk [vmem:[%s2 + $0x40] sm:$0xff] %vm15, 0.0
    %25 = vst.msk [vmem:[%s2 + $0x48] sm:$0xff] %vm15, 0.0
    %26 = vst.msk [vmem:[%s2 + $0x50] sm:$0xff] %vm15, 0.0
    %27 = vst.msk [vmem:[%s2 + $0x58] sm:$0xff] %vm15, 0.0
    %28 = vst.msk [vmem:[%s2 + $0x60] sm:$0xff] %vm15, 0.0
    %29 = vst.msk [vmem:[%s2 + $0x68] sm:$0xff] %vm15, 0.0
    %30 = vst.msk [vmem:[%s2 + $0x70] sm:$0xff] %vm15, 0.0
    %31 = vst.msk [vmem:[%s2 + $0x78] sm:$0xff] %vm15, 0.0
    %32 = vst.msk [vmem:[%s2 + $0x80] sm:$0xff] %vm15, 0.0
    %33 = vst.msk [vmem:[%s2 + $0x88] sm:$0xff] %vm15, 0.0
    %34 = vst.msk [vmem:[%s2 + $0x90] sm:$0xff] %vm15, 0.0
    %35 = vst.msk [vmem:[%s2 + $0x98] sm:$0xff] %vm15, 0.0
    %36 = vst.msk [vmem:[%s2 + $0xa0] sm:$0xff] %vm15, 0.0
    %37 = vst.msk [vmem:[%s2 + $0xa8] sm:$0xff] %vm15, 0.0
    %38 = vst.msk [vmem:[%s2 + $0xb0] sm:$0xff] %vm15, 0.0
    %39 = vst.msk [vmem:[%s2 + $0xb8] sm:$0xff] %vm15, 0.0
    %40 = vst.msk [vmem:[%s2 + $0xc0] sm:$0xff] %vm15, 0.0
  $region13: #{tpu_custom_call.1} parent=0 // pred_fallthru
    _
  %v41 = vld [vmem:[%s2] sm:$0xff]
  %v42 = vld [vmem:[%s2 + $0x8] sm:$0xff]
  %v43 = vld [vmem:[%s2 + $0x10] sm:$0xff]
  %v44 = vld [vmem:[%s2 + $0x18] sm:$0xff]
  %v45 = vld [vmem:[%s2 + $0x20] sm:$0xff]
  %v46 = vld [vmem:[%s2 + $0x28] sm:$0xff]
  %v47 = vld [vmem:[%s2 + $0x30] sm:$0xff]
  %v48 = vld [vmem:[%s2 + $0x38] sm:$0xff]
  %v49 = vld [vmem:[%s2 + $0x40] sm:$0xff]
  %v50 = vld [vmem:[%s2 + $0x48] sm:$0xff]
  %v51 = vld [vmem:[%s2 + $0x50] sm:$0xff]
  %v52 = vld [vmem:[%s2 + $0x58] sm:$0xff]
  %v53 = vld [vmem:[%s2 + $0x60] sm:$0xff]
  %v54 = vld [vmem:[%s2 + $0x68] sm:$0xff]
  %v55 = vld [vmem:[%s2 + $0x70] sm:$0xff]
  %v56 = vld [vmem:[%s2 + $0x78] sm:$0xff]
  %v57 = vld [vmem:[%s2 + $0x80] sm:$0xff]
  %v58 = vld [vmem:[%s2 + $0x88] sm:$0xff]
  %v59 = vld [vmem:[%s2 + $0x90] sm:$0xff]
  %v60 = vld [vmem:[%s2 + $0x98] sm:$0xff]
  %v61 = vld [vmem:[%s2 + $0xa0] sm:$0xff]
  %v62 = vld [vmem:[%s2 + $0xa8] sm:$0xff]
  %v63 = vld [vmem:[%s2 + $0xb0] sm:$0xff]
  %v64 = vld [vmem:[%s2 + $0xb8] sm:$0xff]
  %v65 = vld [vmem:[%s2 + $0xc0] sm:$0xff]
  %v66 = vld [vmem:[%s1] sm:$0xff]
  %v67 = vld [vmem:[%s1 + $0x8] sm:$0xff]
  %v68 = vld [vmem:[%s1 + $0x10] sm:$0xff]
  %v69 = vld [vmem:[%s1 + $0x18] sm:$0xff]
  %v70 = vld [vmem:[%s1 + $0x20] sm:$0xff]
  %v71 = vld [vmem:[%s1 + $0x28] sm:$0xff]
  %v72 = vld [vmem:[%s1 + $0x30] sm:$0xff]
  %v73 = vld [vmem:[%s1 + $0x38] sm:$0xff]
  %v74 = vld [vmem:[%s1 + $0x40] sm:$0xff]
  %v75 = vld [vmem:[%s1 + $0x48] sm:$0xff]
  %v76 = vld [vmem:[%s1 + $0x50] sm:$0xff]
  %v77 = vld [vmem:[%s1 + $0x58] sm:$0xff]
  %v78 = vld [vmem:[%s1 + $0x60] sm:$0xff]
  %v79 = vld [vmem:[%s1 + $0x68] sm:$0xff]
  %v80 = vld [vmem:[%s1 + $0x70] sm:$0xff]
  %v81 = vld [vmem:[%s1 + $0x78] sm:$0xff]
  %v82 = vld [vmem:[%s1 + $0x80] sm:$0xff]
  %v83 = vld [vmem:[%s1 + $0x88] sm:$0xff]
  %v84 = vld [vmem:[%s1 + $0x90] sm:$0xff]
  %v85 = vld [vmem:[%s1 + $0x98] sm:$0xff]
  %v86 = vld [vmem:[%s1 + $0xa0] sm:$0xff]
  %v87 = vld [vmem:[%s1 + $0xa8] sm:$0xff]
  %v88 = vld [vmem:[%s1 + $0xb0] sm:$0xff]
  %v89 = vld [vmem:[%s1 + $0xb8] sm:$0xff]
  %v90 = vld [vmem:[%s1 + $0xc0] sm:$0xff]
  %v91 = vld [vmem:[%s0] sm:$0xff]
  %v92 = vld [vmem:[%s0 + $0x8] sm:$0xff]
  %v93 = vld [vmem:[%s0 + $0x10] sm:$0xff]
  %v94 = vld [vmem:[%s0 + $0x18] sm:$0xff]
  %v95 = vld [vmem:[%s0 + $0x20] sm:$0xff]
  %v96 = vld [vmem:[%s0 + $0x28] sm:$0xff]
  %v97 = vld [vmem:[%s0 + $0x30] sm:$0xff]
  %v98 = vld [vmem:[%s0 + $0x38] sm:$0xff]
  %vm99 = vcmask 523264
  %v101 = vsel %vm99, %v66, 0
  %v104 = vsel %vm99, %v67, 0
  %v107 = vsel %vm99, %v68, 0
  %v110 = vsel %vm99, %v69, 0
  %v113 = vsel %vm99, %v70, 0
  %v116 = vsel %vm99, %v71, 0
  %v119 = vsel %vm99, %v72, 0
  %v122 = vsel %vm99, %v73, 0
  %v125 = vsel %vm99, %v74, 0
  %v128 = vsel %vm99, %v75, 0
  %v131 = vsel %vm99, %v76, 0
  %v134 = vsel %vm99, %v77, 0
  %v137 = vsel %vm99, %v78, 0
  %v140 = vsel %vm99, %v79, 0
  %v143 = vsel %vm99, %v80, 0
  %v146 = vsel %vm99, %v81, 0
  %v149 = vsel %vm99, %v82, 0
  %v152 = vsel %vm99, %v83, 0
  %v155 = vsel %vm99, %v84, 0
  %v158 = vsel %vm99, %v85, 0
  %v161 = vsel %vm99, %v86, 0
  %v164 = vsel %vm99, %v87, 0
  %v167 = vsel %vm99, %v88, 0
  %v170 = vsel %vm99, %v89, 0
  %v173 = vsel %vm99, %v90, 0
  %175 = vmatpush.msra.mxu0 0.0
  %176 = vmatpush.msra.mxu0 0.0
  %177 = vmatpush.msra.mxu0 0.0
  %178 = vmatpush.msra.mxu0 0.0
  %179 = vmatpush.msra.mxu0 0.0
  %180 = vmatpush.msra.mxu0 0.0
  %181 = vmatpush.msra.mxu0 0.0
  %182 = vmatpush.msra.mxu0 0.0
  %183 = vmatpush.msra.mxu0 %v98
  %184 = vmatpush.msra.mxu0 %v97
  %185 = vmatpush.msra.mxu0 %v96
  %186 = vmatpush.msra.mxu0 %v95
  %187 = vmatpush.msra.mxu0 %v94
  %188 = vmatpush.msra.mxu0 %v93
  %189 = vmatpush.msra.mxu0 %v92
  %190 = vmatpush.msra.mxu0 %v91
  %191 = vmatmul.f32.gmra.mxu0 %v101
  %v192 = vpop.f32.mrf.mxu0
  %v193 = vadd.f32 0.0, %v192
  %194 = vmatmul.f32.gmra.mxu0 %v104
  %v195 = vpop.f32.mrf.mxu0
  %v196 = vadd.f32 0.0, %v195
  %197 = vmatmul.f32.gmra.mxu0 %v107
  %v198 = vpop.f32.mrf.mxu0
  %v199 = vadd.f32 0.0, %v198
  %200 = vmatmul.f32.gmra.mxu0 %v110
  %v201 = vpop.f32.mrf.mxu0
  %v202 = vadd.f32 0.0, %v201
  %203 = vmatmul.f32.gmra.mxu0 %v113
  %v204 = vpop.f32.mrf.mxu0
  %v205 = vadd.f32 0.0, %v204
  %206 = vmatmul.f32.gmra.mxu0 %v116
  %v207 = vpop.f32.mrf.mxu0
  %v208 = vadd.f32 0.0, %v207
  %209 = vmatmul.f32.gmra.mxu0 %v119
  %v210 = vpop.f32.mrf.mxu0
  %v211 = vadd.f32 0.0, %v210
  %212 = vmatmul.f32.gmra.mxu0 %v122
  %v213 = vpop.f32.mrf.mxu0
  %v214 = vadd.f32 0.0, %v213
  %215 = vmatmul.f32.gmra.mxu0 %v125
  %v216 = vpop.f32.mrf.mxu0
  %v217 = vadd.f32 0.0, %v216
  %218 = vmatmul.f32.gmra.mxu0 %v128
  %v219 = vpop.f32.mrf.mxu0
  %v220 = vadd.f32 0.0, %v219
  %221 = vmatmul.f32.gmra.mxu0 %v131
  %v222 = vpop.f32.mrf.mxu0
  %v223 = vadd.f32 0.0, %v222
  %224 = vmatmul.f32.gmra.mxu0 %v134
  %v225 = vpop.f32.mrf.mxu0
  %v226 = vadd.f32 0.0, %v225
  %227 = vmatmul.f32.gmra.mxu0 %v137
  %v228 = vpop.f32.mrf.mxu0
  %v229 = vadd.f32 0.0, %v228
  %230 = vmatmul.f32.gmra.mxu0 %v140
  %v231 = vpop.f32.mrf.mxu0
  %v232 = vadd.f32 0.0, %v231
  %233 = vmatmul.f32.gmra.mxu0 %v143
  %v234 = vpop.f32.mrf.mxu0
  %v235 = vadd.f32 0.0, %v234
  %236 = vmatmul.f32.gmra.mxu0 %v146
  %v237 = vpop.f32.mrf.mxu0
  %v238 = vadd.f32 0.0, %v237
  %239 = vmatmul.f32.gmra.mxu0 %v149
  %v240 = vpop.f32.mrf.mxu0
  %v241 = vadd.f32 0.0, %v240
  %242 = vmatmul.f32.gmra.mxu0 %v152
  %v243 = vpop.f32.mrf.mxu0
  %v244 = vadd.f32 0.0, %v243
  %245 = vmatmul.f32.gmra.mxu0 %v155
  %v246 = vpop.f32.mrf.mxu0
  %v247 = vadd.f32 0.0, %v246
  %248 = vmatmul.f32.gmra.mxu0 %v158
  %v249 = vpop.f32.mrf.mxu0
  %v250 = vadd.f32 0.0, %v249
  %251 = vmatmul.f32.gmra.mxu0 %v161
  %v252 = vpop.f32.mrf.mxu0
  %v253 = vadd.f32 0.0, %v252
  %254 = vmatmul.f32.gmra.mxu0 %v164
  %v255 = vpop.f32.mrf.mxu0
  %v256 = vadd.f32 0.0, %v255
  %257 = vmatmul.f32.gmra.mxu0 %v167
  %v258 = vpop.f32.mrf.mxu0
  %v259 = vadd.f32 0.0, %v258
  %260 = vmatmul.f32.gmra.mxu0 %v170
  %v261 = vpop.f32.mrf.mxu0
  %v262 = vadd.f32 0.0, %v261
  %263 = vmatmul.f32.gmra.mxu0 %v173
  %v264 = vpop.f32.mrf.mxu0
  %v265 = vadd.f32 0.0, %v264
  %266 = vdwg.mxu0
  %v267 = vadd.f32 %v41, %v193
  %v268 = vadd.f32 %v42, %v196
  %v269 = vadd.f32 %v43, %v199
  %v270 = vadd.f32 %v44, %v202
  %v271 = vadd.f32 %v45, %v205
  %v272 = vadd.f32 %v46, %v208
  %v273 = vadd.f32 %v47, %v211
  %v274 = vadd.f32 %v48, %v214
  %v275 = vadd.f32 %v49, %v217
  %v276 = vadd.f32 %v50, %v220
  %v277 = vadd.f32 %v51, %v223
  %v278 = vadd.f32 %v52, %v226
  %v279 = vadd.f32 %v53, %v229
  %v280 = vadd.f32 %v54, %v232
  %v281 = vadd.f32 %v55, %v235
  %v282 = vadd.f32 %v56, %v238
  %v283 = vadd.f32 %v57, %v241
  %v284 = vadd.f32 %v58, %v244
  %v285 = vadd.f32 %v59, %v247
  %v286 = vadd.f32 %v60, %v250
  %v287 = vadd.f32 %v61, %v253
  %v288 = vadd.f32 %v62, %v256
  %v289 = vadd.f32 %v63, %v259
  %v290 = vadd.f32 %v64, %v262
  %v291 = vadd.f32 %v65, %v265
  %vm292 = vcmask 261120
  %293 = vst.msk [vmem:[%s2] sm:$0xff] %vm292, %v267
  %294 = vst.msk [vmem:[%s2 + $0x8] sm:$0xff] %vm292, %v268
  %295 = vst.msk [vmem:[%s2 + $0x10] sm:$0xff] %vm292, %v269
  %296 = vst.msk [vmem:[%s2 + $0x18] sm:$0xff] %vm292, %v270
  %297 = vst.msk [vmem:[%s2 + $0x20] sm:$0xff] %vm292, %v271
  %298 = vst.msk [vmem:[%s2 + $0x28] sm:$0xff] %vm292, %v272
  %299 = vst.msk [vmem:[%s2 + $0x30] sm:$0xff] %vm292, %v273
  %300 = vst.msk [vmem:[%s2 + $0x38] sm:$0xff] %vm292, %v274
  %301 = vst.msk [vmem:[%s2 + $0x40] sm:$0xff] %vm292, %v275
  %302 = vst.msk [vmem:[%s2 + $0x48] sm:$0xff] %vm292, %v276
  %303 = vst.msk [vmem:[%s2 + $0x50] sm:$0xff] %vm292, %v277
  %304 = vst.msk [vmem:[%s2 + $0x58] sm:$0xff] %vm292, %v278
  %305 = vst.msk [vmem:[%s2 + $0x60] sm:$0xff] %vm292, %v279
  %306 = vst.msk [vmem:[%s2 + $0x68] sm:$0xff] %vm292, %v280
  %307 = vst.msk [vmem:[%s2 + $0x70] sm:$0xff] %vm292, %v281
  %308 = vst.msk [vmem:[%s2 + $0x78] sm:$0xff] %vm292, %v282
  %309 = vst.msk [vmem:[%s2 + $0x80] sm:$0xff] %vm292, %v283
  %310 = vst.msk [vmem:[%s2 + $0x88] sm:$0xff] %vm292, %v284
  %311 = vst.msk [vmem:[%s2 + $0x90] sm:$0xff] %vm292, %v285
  %312 = vst.msk [vmem:[%s2 + $0x98] sm:$0xff] %vm292, %v286
  %313 = vst.msk [vmem:[%s2 + $0xa0] sm:$0xff] %vm292, %v287
  %314 = vst.msk [vmem:[%s2 + $0xa8] sm:$0xff] %vm292, %v288
  %315 = vst.msk [vmem:[%s2 + $0xb0] sm:$0xff] %vm292, %v289
  %316 = vst.msk [vmem:[%s2 + $0xb8] sm:$0xff] %vm292, %v290
  %317 = vst.msk [vmem:[%s2 + $0xc0] sm:$0xff] %vm292, %v291
  // Predicated region
  $region14: #{tpu_custom_call.1} parent=0 // pred_check
    _
  $region15: #{tpu_custom_call.1} parent=0 // pred_check_branch
    %319 = sbr.rel (0) target = $region17
  $region16: #{tpu_custom_call.1} parent=0 // pred_region
    _
  $region17: #{tpu_custom_call.1} parent=0 // pred_fallthru
    _
  // Predicated region
  $region18: #{tpu_custom_call.1} parent=0 // pred_check
    _
  $region19: #{tpu_custom_call.1} parent=0 // pred_check_branch
    %321 = sbr.rel (0) target = $region21
  $region20: #{tpu_custom_call.1} parent=0 // pred_region
    _
  $region21: #{tpu_custom_call.1} parent=0 // pred_fallthru
    _

</llo_original>
